<compile_context>
chip_gen: v7x
topology: tpu7x:2x2x1
jax: 0.10.0
libtpu: 0.0.40
codegen_flags: <defaults>
</compile_context>

<pallas_src>
import functools
import math

import jax
import jax.numpy as jnp
from jax import lax
from jax.experimental import pallas as pl
from jax.experimental.pallas import tpu as pltpu

_MIB = 1024 * 1024


def _round_up(x, m):
    return (x + m - 1) // m * m


def _pow2_128_le(x):
    """Largest power-of-two multiple of 128 that is <= x (requires x >= 128)."""
    p = 128
    while p * 2 <= x:
        p *= 2
    return p


def _tpu_generation():
    """Best-effort TPU generation (5, 6, 7, ...); 0 if unknown."""
    try:
        kind = jax.devices()[0].device_kind.lower()
    except Exception:
        return 0
    for g in (7, 6, 5, 4, 3, 2):
        if f"v{g}" in kind:
            return g
    return 0


def _supcon_tile_kernel(fk_ref, fqT_ref, idk_ref, idq_ref, out_ref,
                        l_sc, ms_sc, mc_sc,
                        *, b_actual, m_shift, loss_scale, exp_dtype):
    """One (anchor tile i, key tile j) step.

    Tile orientation: keys on rows (sublanes), anchors on columns (lanes), so
    every per-anchor reduction is a sublane fold and the per-anchor state and
    output stay lane-dense (1, block_q).
    """
    i = pl.program_id(0)               # anchor tile ("parallel")
    j = pl.program_id(1)               # key tile (reduction, innermost)
    nj = pl.num_programs(1)
    bk = fk_ref.shape[0]
    bq = fqT_ref.shape[1]

    @pl.when(j == 0)
    def _init():
        l_sc[...] = jnp.zeros_like(l_sc)
        ms_sc[...] = jnp.zeros_like(ms_sc)
        mc_sc[...] = jnp.zeros_like(mc_sc)

    # (bk, bq) similarity tile.  Features were pre-normalized and pre-scaled
    # by 1/sqrt(T), so s == <f_key, f_anchor> / temperature.  Plain NN matmul
    # (no in-kernel transpose of either operand).
    s = jnp.dot(fk_ref[...], fqT_ref[...], preferred_element_type=jnp.float32)

    # Positive-pair mask from class-id equality (labels are strictly one-hot).
    same_class = idk_ref[...] == idq_ref[...]          # (bk,1)==(1,bq) -> (bk,bq)

    # Softmax numerators with a FIXED shift m = 1/T (s <= 1/T exactly since the
    # features are unit-norm).  exp runs in bf16 on v6e/v7x, f32 elsewhere;
    # row sums are accumulated in f32.
    p = jnp.exp((s - m_shift).astype(exp_dtype)).astype(jnp.float32)

    # Scalar predicate: does this tile need the diagonal / key-padding mask?
    key0 = j * bk
    anc0 = i * bq
    touches_diag = jnp.logical_and(anc0 < key0 + bk, key0 < anc0 + bq)
    has_pad_keys = key0 + bk > b_actual
    needs_mask = jnp.logical_or(touches_diag, has_pad_keys)

    @pl.when(needs_mask)
    def _masked_accumulate():
        key_g = key0 + lax.broadcasted_iota(jnp.int32, (bk, bq), 0)
        anc_g = anc0 + lax.broadcasted_iota(jnp.int32, (bk, bq), 1)
        contrib = jnp.logical_and(key_g != anc_g, key_g < b_actual)
        valid_pos = jnp.logical_and(contrib, same_class)
        l_sc[...] += jnp.sum(jnp.where(contrib, p, 0.0), axis=0, keepdims=True)
        ms_sc[...] += jnp.sum(jnp.where(valid_pos, s, 0.0), axis=0, keepdims=True)
        mc_sc[...] += jnp.sum(jnp.where(valid_pos, 1.0, 0.0), axis=0, keepdims=True)

    @pl.when(jnp.logical_not(needs_mask))
    def _fast_accumulate():
        # Interior tile: no diagonal, no padded keys -> every column is valid.
        l_sc[...] += jnp.sum(p, axis=0, keepdims=True)
        ms_sc[...] += jnp.sum(jnp.where(same_class, s, 0.0), axis=0, keepdims=True)
        mc_sc[...] += jnp.sum(jnp.where(same_class, 1.0, 0.0), axis=0, keepdims=True)

    @pl.when(j == nj - 1)
    def _finalize():
        # log-softmax is shift invariant:
        #   sum_k mask*log_prob = sum_k mask*s - (sum_k mask) * logsumexp(s)
        lse = m_shift + jnp.log(l_sc[...])
        mc = mc_sc[...]
        denom = jnp.where(mc < 1e-6, 1.0, mc)
        mean_log_prob_pos = (ms_sc[...] - mc * lse) / denom
        out_ref[...] = (loss_scale * mean_log_prob_pos).astype(out_ref.dtype)


def _pick_tiles(b128, d_pad, gen):
    """Default (block_q, block_k); both 128-multiples, one divides the other."""
    # block_k cap: amortize per-grid-step overhead when D is small.
    if d_pad <= 512:
        bk_cap = 2048
    elif d_pad <= 1024:
        bk_cap = 1024
    else:
        bk_cap = 512
    if b128 <= 1024:
        bq, bk = b128, b128              # whole batch in one tile pair
        if gen >= 7 and b128 >= 256 and (b128 // 2) % 128 == 0:
            bq = b128 // 2               # >= 2 row tiles so both v7x cores work
    else:
        bq = 512                          # key-stream intensity ~ bq flop/byte
        bk = min(bk_cap, _pow2_128_le(b128))
    return bq, bk


def _vmem_estimate(bq, bk, d_pad, itemsize):
    feat = 2 * (bq + bk) * d_pad * itemsize    # double-buffered feature tiles
    temps = 5 * bq * bk * 4                    # live f32 (bk, bq) tile temporaries
    small = 2 * (bq + bk) * 4 + 4 * bq * 4     # id tiles + per-anchor scratch/out
    return feat + temps + small


def supcon_loss(features, labels, temperature=0.07, base_temperature=0.07,
                block_q=None, block_k=None, compute_dtype=jnp.bfloat16,
                exp_dtype=None):
    """features: [B, D] float, labels: [B, C] one-hot. Returns scalar f32 loss.

    Notes:
      * labels must be strictly one-hot (class ids recovered with argmax); an
        all-zero / multi-hot row diverges from the labels @ labels.T mask of
        the reference module.
      * compute_dtype is the MXU operand dtype. bf16 (default) gives absolute
        logit errors ~1e-1 at T=0.07 (fine as a training loss); pass
        jnp.float32 for bit-accurate checking.
      * the fixed softmax shift assumes temperature >= ~0.025 (default 0.07).
    """
    if temperature <= 0:
        raise ValueError("temperature must be > 0")

    B, D = features.shape
    gen = _tpu_generation()
    compute_dtype = jnp.dtype(compute_dtype)
    if exp_dtype is None:
        # bf16 EUP path only on v6e/v7x, and only on the fast (bf16) path.
        exp_dtype = (jnp.bfloat16
                     if (gen >= 6 and compute_dtype != jnp.dtype(jnp.float32))
                     else jnp.float32)

    b128 = _round_up(max(B, 1), 128)
    d_pad = _round_up(D, 128)

    if block_q is None and block_k is None:
        block_q, block_k = _pick_tiles(b128, d_pad, gen)
    else:
        if block_q is None:
            block_q = block_k
        if block_k is None:
            block_k = block_q
    big, small = max(block_q, block_k), min(block_q, block_k)
    if small <= 0 or big % small or big % 128 or small % 128:
        raise ValueError(
            "block_q / block_k must be 128-multiples with one dividing the other")

    B_pad = _round_up(B, big)

    itemsize = compute_dtype.itemsize
    if gen >= 7:
        vmem_budget = 56 * _MIB      # 64 MiB physical on v7x; leave Mosaic headroom
    elif gen in (5, 6):
        vmem_budget = 100 * _MIB     # 128 MiB physical on v5e / v6e
    else:
        vmem_budget = 64 * _MIB
    # If the tiles overshoot the budget, shed key-tile size (never block_q:
    # that would cut the key-stream arithmetic intensity).
    while (_vmem_estimate(block_q, block_k, d_pad, itemsize) > vmem_budget
           and block_k > 128 and (block_k // 2) % 128 == 0
           and B_pad % (block_k // 2) == 0):
        block_k //= 2
    vmem_est = _vmem_estimate(block_q, block_k, d_pad, itemsize)
    vmem_limit = int(min(vmem_budget, max(32 * _MIB, int(1.5 * vmem_est))))

    grid = (B_pad // block_q, B_pad // block_k)

    # F.normalize(p=2, dim=1, eps=1e-12) in f32, fold 1/sqrt(T), cast for MXU.
    f = features.astype(jnp.float32)
    sumsq = jnp.sum(f * f, axis=1, keepdims=True)
    inv_norm = lax.rsqrt(jnp.maximum(sumsq, 1e-24))      # = 1 / max(||x||, 1e-12)
    f = (f * (inv_norm * (1.0 / math.sqrt(temperature)))).astype(compute_dtype)

    f_pad = jnp.pad(f, ((0, B_pad - B), (0, d_pad - D)))    # keys     (B_pad, D_pad)
    fT_pad = jnp.transpose(f_pad)                           # anchors^T (D_pad, B_pad)

    class_ids = jnp.argmax(labels, axis=1).astype(jnp.int32)    # one-hot -> ids
    ids_pad = jnp.pad(class_ids, (0, B_pad - B), constant_values=-1)
    ids_k = ids_pad.reshape(B_pad, 1)
    ids_q = ids_pad.reshape(1, B_pad)

    cost = pl.CostEstimate(
        flops=int(2 * B_pad * B_pad * d_pad),
        transcendentals=int(B_pad * B_pad),
        bytes_accessed=int((grid[0] + 1) * B_pad * d_pad * itemsize
                           + 3 * B_pad * 4),
    )

    kernel = functools.partial(
        _supcon_tile_kernel,
        b_actual=B,
        m_shift=float(1.0 / temperature),
        loss_scale=float(-(temperature / base_temperature)),
        exp_dtype=exp_dtype,
    )

    per_anchor = pl.pallas_call(
        kernel,
        out_shape=jax.ShapeDtypeStruct((1, B_pad), jnp.float32),
        grid_spec=pltpu.PrefetchScalarGridSpec(
            num_scalar_prefetch=0,
            grid=grid,
            in_specs=[
                pl.BlockSpec((block_k, d_pad), lambda i, j: (j, 0)),   # key feats
                pl.BlockSpec((d_pad, block_q), lambda i, j: (0, i)),   # anchor feats^T
                pl.BlockSpec((block_k, 1), lambda i, j: (j, 0)),       # key class ids
                pl.BlockSpec((1, block_q), lambda i, j: (0, i)),       # anchor class ids
            ],
            out_specs=pl.BlockSpec((1, block_q), lambda i, j: (0, i)),
            scratch_shapes=[pltpu.VMEM((1, block_q), jnp.float32)] * 3,
        ),
        compiler_params=pltpu.CompilerParams(
            dimension_semantics=("parallel", "arbitrary"),
            vmem_limit_bytes=vmem_limit,
        ),
        cost_estimate=cost,
    )(f_pad, fT_pad, ids_k, ids_q)

    # Padded anchors produce exactly 0; mean over the real B anchors.
    return jnp.sum(per_anchor[0, :B]) / B


def _reference_supcon(features, labels, temperature=0.07, base_temperature=0.07):
    # Pure-JAX f32 reference mirroring the PyTorch forward.
    f = features.astype(jnp.float32)
    f = f / jnp.maximum(jnp.linalg.norm(f, axis=1, keepdims=True), 1e-12)
    B = f.shape[0]
    mask = labels.astype(jnp.float32) @ labels.astype(jnp.float32).T
    adc = (f @ f.T) / temperature
    logits = adc - jnp.max(adc, axis=1, keepdims=True)
    logits_mask = jnp.ones((B, B)) - jnp.eye(B)
    mask = mask * logits_mask
    exp_logits = jnp.exp(logits) * logits_mask
    log_prob = logits - jnp.log(exp_logits.sum(1, keepdims=True))
    mpp = mask.sum(1)
    mpp = jnp.where(mpp < 1e-6, 1.0, mpp)
    mlpp = (mask * log_prob).sum(1) / mpp
    return jnp.mean(-(temperature / base_temperature) * mlpp)


if __name__ == "__main__":
    key = jax.random.PRNGKey(0)
    kf, kl = jax.random.split(key)

    B, D, C = 8, 32, 4
    features = jax.random.normal(kf, (B, D), dtype=jnp.float32)
    class_ids = jax.random.randint(kl, (B,), 0, C)
    labels = jax.nn.one_hot(class_ids, C, dtype=jnp.float32)

    ref = jax.block_until_ready(_reference_supcon(features, labels))

    # f32 MXU + f32 exp path: tight check of the tiled fixed-shift softmax math.
    loss_f32 = jax.block_until_ready(
        jax.jit(functools.partial(supcon_loss, compute_dtype=jnp.float32))(
            features, labels))
    assert jnp.allclose(loss_f32, ref, atol=1e-4, rtol=1e-4), (loss_f32, ref)

    # Default fast path (bf16 MXU, bf16 exp on v6e/v7x): loose tolerance.
    loss_fast = jax.block_until_ready(jax.jit(supcon_loss)(features, labels))
    assert jnp.allclose(loss_fast, ref, atol=5e-2, rtol=5e-2), (loss_fast, ref)

    print("KERNEL_OK")
</pallas_src>

<mosaic_0001>
module attributes {stable_mosaic.version = 11 : i64} {
  func.func @_supcon_tile_kernel(%arg0: i32, %arg1: i32, %arg2: memref<128x128xf32, #tpu.memory_space<vmem>>, %arg3: memref<128x128xf32, #tpu.memory_space<vmem>>, %arg4: memref<128x1xi32, #tpu.memory_space<vmem>>, %arg5: memref<1x128xi32, #tpu.memory_space<vmem>>, %arg6: memref<1x128xf32, #tpu.memory_space<vmem>>, %arg7: memref<1x128xf32, #tpu.memory_space<vmem>>, %arg8: memref<1x128xf32, #tpu.memory_space<vmem>>, %arg9: memref<1x128xf32, #tpu.memory_space<vmem>>) attributes {dimension_semantics = [#tpu.dimension_semantics<parallel>, #tpu.dimension_semantics<arbitrary>], iteration_bounds = array<i64: 1, 1>, scalar_prefetch = 0 : i64, scratch_operands = 3 : i64, tpu.core_type = #tpu.core_type<tc>, window_params = [{transform_indices = @transform_0, window_bounds = array<i64: 128, 128>}, {transform_indices = @transform_1, window_bounds = array<i64: 128, 128>}, {transform_indices = @transform_2, window_bounds = array<i64: 128, 1>}, {transform_indices = @transform_3, window_bounds = array<i64: 1, 128>}, {transform_indices = @transform_4, window_bounds = array<i64: 1, 128>}]} {
    %c0_i32 = arith.constant 0 : i32
    %0 = arith.cmpi eq, %arg1, %c0_i32 : i32
    %1 = arith.extui %0 : i1 to i32
    %c0_i32_0 = arith.constant 0 : i32
    %2 = arith.cmpi ne, %1, %c0_i32_0 : i32
    scf.if %2 {
      %cst_17 = arith.constant 0.000000e+00 : f32
      %32 = vector.broadcast %cst_17 : f32 to vector<1x128xf32>
      %c0_18 = arith.constant 0 : index
      %c0_19 = arith.constant 0 : index
      %33 = vector.load %arg7[%c0_18, %c0_19] : memref<1x128xf32, #tpu.memory_space<vmem>>, vector<1x128xf32>
      tpu.vector_store %arg7[%c0_18, %c0_19], %32 {strides = array<i32>} : memref<1x128xf32, #tpu.memory_space<vmem>>, vector<1x128xf32>,
      %cst_20 = arith.constant 0.000000e+00 : f32
      %34 = vector.broadcast %cst_20 : f32 to vector<1x128xf32>
      %c0_21 = arith.constant 0 : index
      %c0_22 = arith.constant 0 : index
      %35 = vector.load %arg8[%c0_21, %c0_22] : memref<1x128xf32, #tpu.memory_space<vmem>>, vector<1x128xf32>
      tpu.vector_store %arg8[%c0_21, %c0_22], %34 {strides = array<i32>} : memref<1x128xf32, #tpu.memory_space<vmem>>, vector<1x128xf32>,
      %cst_23 = arith.constant 0.000000e+00 : f32
      %36 = vector.broadcast %cst_23 : f32 to vector<1x128xf32>
      %c0_24 = arith.constant 0 : index
      %c0_25 = arith.constant 0 : index
      %37 = vector.load %arg9[%c0_24, %c0_25] : memref<1x128xf32, #tpu.memory_space<vmem>>, vector<1x128xf32>
      tpu.vector_store %arg9[%c0_24, %c0_25], %36 {strides = array<i32>} : memref<1x128xf32, #tpu.memory_space<vmem>>, vector<1x128xf32>,
    } else {
    }
    %c0 = arith.constant 0 : index
    %c0_1 = arith.constant 0 : index
    %3 = vector.load %arg2[%c0, %c0_1] : memref<128x128xf32, #tpu.memory_space<vmem>>, vector<128x128xf32>
    %c0_2 = arith.constant 0 : index
    %c0_3 = arith.constant 0 : index
    %4 = vector.load %arg3[%c0_2, %c0_3] : memref<128x128xf32, #tpu.memory_space<vmem>>, vector<128x128xf32>
    %cst = arith.constant dense<0.000000e+00> : vector<128x128xf32>
    %5 = tpu.matmul %3, %4, %cst {dimension_numbers = #tpu.dot_dimension_numbers<[1], [0], [0], [1], [0, 0, 1, 1], [], []>} : vector<128x128xf32>, vector<128x128xf32>, vector<128x128xf32> -> vector<128x128xf32>
    %c0_4 = arith.constant 0 : index
    %c0_5 = arith.constant 0 : index
    %6 = vector.load %arg4[%c0_4, %c0_5] : memref<128x1xi32, #tpu.memory_space<vmem>>, vector<128x1xi32>
    %c0_6 = arith.constant 0 : index
    %c0_7 = arith.constant 0 : index
    %7 = vector.load %arg5[%c0_6, %c0_7] : memref<1x128xi32, #tpu.memory_space<vmem>>, vector<1x128xi32>
    %8 = vector.broadcast %6 : vector<128x1xi32> to vector<128x128xi32>
    %9 = vector.broadcast %7 : vector<1x128xi32> to vector<128x128xi32>
    %10 = arith.cmpi eq, %8, %9 : vector<128x128xi32>
    %cst_8 = arith.constant 14.2857141 : f32
    %11 = vector.broadcast %cst_8 : f32 to vector<128x128xf32>
    %12 = arith.subf %5, %11 : vector<128x128xf32>
    %13 = math.exp %12 : vector<128x128xf32>
    %c128_i32 = arith.constant 128 : i32
    %14 = arith.muli %arg1, %c128_i32 : i32
    %c128_i32_9 = arith.constant 128 : i32
    %15 = arith.muli %arg0, %c128_i32_9 : i32
    %c128_i32_10 = arith.constant 128 : i32
    %16 = arith.addi %14, %c128_i32_10 : i32
    %17 = arith.cmpi slt, %15, %16 : i32
    %c128_i32_11 = arith.constant 128 : i32
    %18 = arith.addi %15, %c128_i32_11 : i32
    %19 = arith.cmpi slt, %14, %18 : i32
    %20 = arith.andi %17, %19 : i1
    %c128_i32_12 = arith.constant 128 : i32
    %21 = arith.addi %14, %c128_i32_12 : i32
    %c8_i32 = arith.constant 8 : i32
    %22 = arith.cmpi sgt, %21, %c8_i32 : i32
    %23 = arith.ori %20, %22 : i1
    %24 = arith.extui %23 : i1 to i32
    %c0_i32_13 = arith.constant 0 : i32
    %25 = arith.cmpi ne, %24, %c0_i32_13 : i32
    scf.if %25 {
      %32 = tpu.iota {dimensions = array<i32: 0>} : vector<128x128xi32>
      %33 = vector.broadcast %14 : i32 to vector<128x128xi32>
      %34 = arith.addi %33, %32 : vector<128x128xi32>
      %35 = tpu.iota {dimensions = array<i32: 1>} : vector<128x128xi32>
      %36 = vector.broadcast %15 : i32 to vector<128x128xi32>
      %37 = arith.addi %36, %35 : vector<128x128xi32>
      %38 = arith.cmpi ne, %34, %37 : vector<128x128xi32>
      %c8_i32_17 = arith.constant 8 : i32
      %39 = vector.broadcast %c8_i32_17 : i32 to vector<128x128xi32>
      %40 = arith.cmpi slt, %34, %39 : vector<128x128xi32>
      %41 = arith.andi %38, %40 : vector<128x128xi1>
      %42 = arith.andi %41, %10 : vector<128x128xi1>
      %c0_18 = arith.constant 0 : index
      %c0_19 = arith.constant 0 : index
      %43 = vector.load %arg7[%c0_18, %c0_19] : memref<1x128xf32, #tpu.memory_space<vmem>>, vector<1x128xf32>
      %cst_20 = arith.constant 0.000000e+00 : f32
      %44 = vector.broadcast %cst_20 : f32 to vector<128x128xf32>
      %45 = arith.select %41, %13, %44 : vector<128x128xi1>, vector<128x128xf32>
      %cst_21 = arith.constant dense<0.000000e+00> : vector<128xf32>
      %46 = vector.multi_reduction <add>, %45, %cst_21 [0] : vector<128x128xf32> to vector<128xf32>
      %47 = vector.shape_cast %46 : vector<128xf32> to vector<1x128xf32>
      %48 = arith.addf %43, %47 : vector<1x128xf32>
      %c0_22 = arith.constant 0 : index
      %c0_23 = arith.constant 0 : index
      %49 = vector.load %arg7[%c0_22, %c0_23] : memref<1x128xf32, #tpu.memory_space<vmem>>, vector<1x128xf32>
      tpu.vector_store %arg7[%c0_22, %c0_23], %48 {strides = array<i32>} : memref<1x128xf32, #tpu.memory_space<vmem>>, vector<1x128xf32>,
      %c0_24 = arith.constant 0 : index
      %c0_25 = arith.constant 0 : index
      %50 = vector.load %arg8[%c0_24, %c0_25] : memref<1x128xf32, #tpu.memory_space<vmem>>, vector<1x128xf32>
      %cst_26 = arith.constant 0.000000e+00 : f32
      %51 = vector.broadcast %cst_26 : f32 to vector<128x128xf32>
      %52 = arith.select %42, %5, %51 : vector<128x128xi1>, vector<128x128xf32>
      %cst_27 = arith.constant dense<0.000000e+00> : vector<128xf32>
      %53 = vector.multi_reduction <add>, %52, %cst_27 [0] : vector<128x128xf32> to vector<128xf32>
      %54 = vector.shape_cast %53 : vector<128xf32> to vector<1x128xf32>
      %55 = arith.addf %50, %54 : vector<1x128xf32>
      %c0_28 = arith.constant 0 : index
      %c0_29 = arith.constant 0 : index
      %56 = vector.load %arg8[%c0_28, %c0_29] : memref<1x128xf32, #tpu.memory_space<vmem>>, vector<1x128xf32>
      tpu.vector_store %arg8[%c0_28, %c0_29], %55 {strides = array<i32>} : memref<1x128xf32, #tpu.memory_space<vmem>>, vector<1x128xf32>,
      %c0_30 = arith.constant 0 : index
      %c0_31 = arith.constant 0 : index
      %57 = vector.load %arg9[%c0_30, %c0_31] : memref<1x128xf32, #tpu.memory_space<vmem>>, vector<1x128xf32>
      %cst_32 = arith.constant 1.000000e+00 : f32
      %cst_33 = arith.constant 0.000000e+00 : f32
      %58 = vector.broadcast %cst_32 : f32 to vector<128x128xf32>
      %59 = vector.broadcast %cst_33 : f32 to vector<128x128xf32>
      %60 = arith.select %42, %58, %59 : vector<128x128xi1>, vector<128x128xf32>
      %cst_34 = arith.constant dense<0.000000e+00> : vector<128xf32>
      %61 = vector.multi_reduction <add>, %60, %cst_34 [0] : vector<128x128xf32> to vector<128xf32>
      %62 = vector.shape_cast %61 : vector<128xf32> to vector<1x128xf32>
      %63 = arith.addf %57, %62 : vector<1x128xf32>
      %c0_35 = arith.constant 0 : index
      %c0_36 = arith.constant 0 : index
      %64 = vector.load %arg9[%c0_35, %c0_36] : memref<1x128xf32, #tpu.memory_space<vmem>>, vector<1x128xf32>
      tpu.vector_store %arg9[%c0_35, %c0_36], %63 {strides = array<i32>} : memref<1x128xf32, #tpu.memory_space<vmem>>, vector<1x128xf32>,
    } else {
    }
    %true = arith.constant true
    %26 = arith.xori %23, %true : i1
    %27 = arith.extui %26 : i1 to i32
    %c0_i32_14 = arith.constant 0 : i32
    %28 = arith.cmpi ne, %27, %c0_i32_14 : i32
    scf.if %28 {
      %c0_17 = arith.constant 0 : index
      %c0_18 = arith.constant 0 : index
      %32 = vector.load %arg7[%c0_17, %c0_18] : memref<1x128xf32, #tpu.memory_space<vmem>>, vector<1x128xf32>
      %cst_19 = arith.constant dense<0.000000e+00> : vector<128xf32>
      %33 = vector.multi_reduction <add>, %13, %cst_19 [0] : vector<128x128xf32> to vector<128xf32>
      %34 = vector.shape_cast %33 : vector<128xf32> to vector<1x128xf32>
      %35 = arith.addf %32, %34 : vector<1x128xf32>
      %c0_20 = arith.constant 0 : index
      %c0_21 = arith.constant 0 : index
      %36 = vector.load %arg7[%c0_20, %c0_21] : memref<1x128xf32, #tpu.memory_space<vmem>>, vector<1x128xf32>
      tpu.vector_store %arg7[%c0_20, %c0_21], %35 {strides = array<i32>} : memref<1x128xf32, #tpu.memory_space<vmem>>, vector<1x128xf32>,
      %c0_22 = arith.constant 0 : index
      %c0_23 = arith.constant 0 : index
      %37 = vector.load %arg8[%c0_22, %c0_23] : memref<1x128xf32, #tpu.memory_space<vmem>>, vector<1x128xf32>
      %cst_24 = arith.constant 0.000000e+00 : f32
      %38 = vector.broadcast %cst_24 : f32 to vector<128x128xf32>
      %39 = arith.select %10, %5, %38 : vector<128x128xi1>, vector<128x128xf32>
      %cst_25 = arith.constant dense<0.000000e+00> : vector<128xf32>
      %40 = vector.multi_reduction <add>, %39, %cst_25 [0] : vector<128x128xf32> to vector<128xf32>
      %41 = vector.shape_cast %40 : vector<128xf32> to vector<1x128xf32>
      %42 = arith.addf %37, %41 : vector<1x128xf32>
      %c0_26 = arith.constant 0 : index
      %c0_27 = arith.constant 0 : index
      %43 = vector.load %arg8[%c0_26, %c0_27] : memref<1x128xf32, #tpu.memory_space<vmem>>, vector<1x128xf32>
      tpu.vector_store %arg8[%c0_26, %c0_27], %42 {strides = array<i32>} : memref<1x128xf32, #tpu.memory_space<vmem>>, vector<1x128xf32>,
      %c0_28 = arith.constant 0 : index
      %c0_29 = arith.constant 0 : index
      %44 = vector.load %arg9[%c0_28, %c0_29] : memref<1x128xf32, #tpu.memory_space<vmem>>, vector<1x128xf32>
      %cst_30 = arith.constant 1.000000e+00 : f32
      %cst_31 = arith.constant 0.000000e+00 : f32
      %45 = vector.broadcast %cst_30 : f32 to vector<128x128xf32>
      %46 = vector.broadcast %cst_31 : f32 to vector<128x128xf32>
      %47 = arith.select %10, %45, %46 : vector<128x128xi1>, vector<128x128xf32>
      %cst_32 = arith.constant dense<0.000000e+00> : vector<128xf32>
      %48 = vector.multi_reduction <add>, %47, %cst_32 [0] : vector<128x128xf32> to vector<128xf32>
      %49 = vector.shape_cast %48 : vector<128xf32> to vector<1x128xf32>
      %50 = arith.addf %44, %49 : vector<1x128xf32>
      %c0_33 = arith.constant 0 : index
      %c0_34 = arith.constant 0 : index
      %51 = vector.load %arg9[%c0_33, %c0_34] : memref<1x128xf32, #tpu.memory_space<vmem>>, vector<1x128xf32>
      tpu.vector_store %arg9[%c0_33, %c0_34], %50 {strides = array<i32>} : memref<1x128xf32, #tpu.memory_space<vmem>>, vector<1x128xf32>,
    } else {
    }
    %c0_i32_15 = arith.constant 0 : i32
    %29 = arith.cmpi eq, %arg1, %c0_i32_15 : i32
    %30 = arith.extui %29 : i1 to i32
    %c0_i32_16 = arith.constant 0 : i32
    %31 = arith.cmpi ne, %30, %c0_i32_16 : i32
    scf.if %31 {
      %c0_17 = arith.constant 0 : index
      %c0_18 = arith.constant 0 : index
      %32 = vector.load %arg7[%c0_17, %c0_18] : memref<1x128xf32, #tpu.memory_space<vmem>>, vector<1x128xf32>
      %33 = math.log %32 : vector<1x128xf32>
      %cst_19 = arith.constant 14.2857141 : f32
      %34 = vector.broadcast %cst_19 : f32 to vector<1x128xf32>
      %35 = arith.addf %34, %33 : vector<1x128xf32>
      %c0_20 = arith.constant 0 : index
      %c0_21 = arith.constant 0 : index
      %36 = vector.load %arg9[%c0_20, %c0_21] : memref<1x128xf32, #tpu.memory_space<vmem>>, vector<1x128xf32>
      %cst_22 = arith.constant 9.99999997E-7 : f32
      %37 = vector.broadcast %cst_22 : f32 to vector<1x128xf32>
      %38 = arith.cmpf olt, %36, %37 : vector<1x128xf32>
      %cst_23 = arith.constant 1.000000e+00 : f32
      %39 = vector.broadcast %cst_23 : f32 to vector<1x128xf32>
      %40 = arith.select %38, %39, %36 : vector<1x128xi1>, vector<1x128xf32>
      %c0_24 = arith.constant 0 : index
      %c0_25 = arith.constant 0 : index
      %41 = vector.load %arg8[%c0_24, %c0_25] : memref<1x128xf32, #tpu.memory_space<vmem>>, vector<1x128xf32>
      %42 = arith.mulf %36, %35 : vector<1x128xf32>
      %43 = arith.subf %41, %42 : vector<1x128xf32>
      %44 = arith.divf %43, %40 : vector<1x128xf32>
      %cst_26 = arith.constant -1.000000e+00 : f32
      %45 = vector.broadcast %cst_26 : f32 to vector<1x128xf32>
      %46 = arith.mulf %45, %44 : vector<1x128xf32>
      %c0_27 = arith.constant 0 : index
      %c0_28 = arith.constant 0 : index
      %47 = vector.load %arg6[%c0_27, %c0_28] : memref<1x128xf32, #tpu.memory_space<vmem>>, vector<1x128xf32>
      tpu.vector_store %arg6[%c0_27, %c0_28], %46 {strides = array<i32>} : memref<1x128xf32, #tpu.memory_space<vmem>>, vector<1x128xf32>,
    } else {
    }
    return
  }
  func.func @transform_0(%arg0: i32, %arg1: i32) -> (i32, i32) {
    %c0_i32 = arith.constant 0 : i32
    %c0_i32_0 = arith.constant 0 : i32
    return %arg1, %c0_i32 : i32, i32
  }
  func.func @transform_1(%arg0: i32, %arg1: i32) -> (i32, i32) {
    %c0_i32 = arith.constant 0 : i32
    %c0_i32_0 = arith.constant 0 : i32
    return %c0_i32, %arg0 : i32, i32
  }
  func.func @transform_2(%arg0: i32, %arg1: i32) -> (i32, i32) {
    %c0_i32 = arith.constant 0 : i32
    %c0_i32_0 = arith.constant 0 : i32
    return %arg1, %c0_i32 : i32, i32
  }
  func.func @transform_3(%arg0: i32, %arg1: i32) -> (i32, i32) {
    %c0_i32 = arith.constant 0 : i32
    %c0_i32_0 = arith.constant 0 : i32
    return %c0_i32, %arg0 : i32, i32
  }
  func.func @transform_4(%arg0: i32, %arg1: i32) -> (i32, i32) {
    %c0_i32 = arith.constant 0 : i32
    %c0_i32_0 = arith.constant 0 : i32
    return %c0_i32, %arg0 : i32, i32
  }
}

</mosaic_0001>

<llo_original>
// kernel: supcon_loss.1
$region0: #{supcon_loss.1}
  #allocation0 [shape = 'u32[]', space=smem, size = 0x4, offset = 0x4, fixed_abs, tag = 'smem constant byte address 0x4 - core index']
  #allocation1 [shape = 'u32[144,128]{1,0:T(1,128)}', space=vmem, size = 0x12000, scoped, tag = 'internal scratch']
  #allocation2 [shape = 'f32[1,128]{1,0:T(1,128)}', space=vmem, size = 0x200, scoped, tag = 'scratch operand']
  #allocation3 [shape = 'f32[1,128]{1,0:T(1,128)}', space=vmem, size = 0x200, scoped, tag = 'scratch operand']
  #allocation4 [shape = 'f32[1,128]{1,0:T(1,128)}', space=vmem, size = 0x200, scoped, tag = 'scratch operand']
  %s0 = inlined_call_operand.vmem [shape: f32[128,128], index: 0, kind: input, shape index: {}]
  %s1 = inlined_call_operand.vmem [shape: f32[128,128], index: 1, kind: input, shape index: {}]
  %s2 = inlined_call_operand.vmem [shape: s32[128,1], index: 2, kind: input, shape index: {}]
  %s3 = inlined_call_operand.vmem [shape: s32[1,128], index: 3, kind: input, shape index: {}]
  %s4 = inlined_call_operand.vmem [shape: f32[1,128], index: 4, kind: output, shape index: {}]
  %s5 = sld [smem:[#allocation0]]
  $region42: #{supcon_loss.1} parent=0
    _
  %s7 = ssub.s32 1, %s5
  %s8 = scalar_select 0, %s7, %s5
  // Predicated region
  $region2: #{supcon_loss.1} parent=0 // pred_check
    _
  $region3: #{supcon_loss.1} parent=0 // pred_check_branch
    %10 = sbr.rel (0) target = $region5
  $region4: #{supcon_loss.1} parent=0 // pred_region
    _
  $region5: #{supcon_loss.1} parent=0 // pred_fallthru
    _
  // Predicated region
  $region6: #{supcon_loss.1} parent=0 // pred_check
    _
  $region7: #{supcon_loss.1} parent=0 // pred_check_branch
    %12 = sbr.rel (0) target = $region9
  $region8: #{supcon_loss.1} parent=0 // pred_region
    _
  $region9: #{supcon_loss.1} parent=0 // pred_fallthru
    _
  // Predicated region
  $region10: #{supcon_loss.1} parent=0 // pred_check
    _
  $region11: #{supcon_loss.1} parent=0 // pred_check_branch
    %14 = sbr.rel (0) target = $region13
  $region12: #{supcon_loss.1} parent=0 // pred_region
    _
  $region13: #{supcon_loss.1} parent=0 // pred_fallthru
    _
  // Predicated region
  $region14: #{supcon_loss.1} parent=0 // pred_check
    _
  $region15: #{supcon_loss.1} parent=0 // pred_check_branch
    %16 = sbr.rel (0) target = $region17
  $region16: #{supcon_loss.1} parent=0 // pred_region
    _
  $region17: #{supcon_loss.1} parent=0 // pred_fallthru
    _
  %p17 = scmp.eq.s32.totalorder 0, 0
  // Predicated region
  $region18: #{supcon_loss.1} parent=0 // pred_check
    %p18 = pneg %p17
  $region19: #{supcon_loss.1} parent=0 // pred_check_branch
    %20 = sbr.rel (%p18) target = $region21
  $region20: #{supcon_loss.1} parent=0 // pred_region
    %21 = vst [vmem:[#allocation2] sm:$0x1] 0.0
    %22 = vst [vmem:[#allocation3] sm:$0x1] 0.0
    %23 = vst [vmem:[#allocation4] sm:$0x1] 0.0
  $region21: #{supcon_loss.1} parent=0 // pred_fallthru
    _
  %v24 = vld [vmem:[%s0] sm:$0xff]
  %v25 = vld [vmem:[%s0 + $0x8] sm:$0xff]
  %v26 = vld [vmem:[%s0 + $0x10] sm:$0xff]
  %v27 = vld [vmem:[%s0 + $0x18] sm:$0xff]
  %v28 = vld [vmem:[%s0 + $0x20] sm:$0xff]
  %v29 = vld [vmem:[%s0 + $0x28] sm:$0xff]
  %v30 = vld [vmem:[%s0 + $0x30] sm:$0xff]
  %v31 = vld [vmem:[%s0 + $0x38] sm:$0xff]
  %v32 = vld [vmem:[%s0 + $0x40] sm:$0xff]
  %v33 = vld [vmem:[%s0 + $0x48] sm:$0xff]
  %v34 = vld [vmem:[%s0 + $0x50] sm:$0xff]
  %v35 = vld [vmem:[%s0 + $0x58] sm:$0xff]
  %v36 = vld [vmem:[%s0 + $0x60] sm:$0xff]
  %v37 = vld [vmem:[%s0 + $0x68] sm:$0xff]
  %v38 = vld [vmem:[%s0 + $0x70] sm:$0xff]
  %v39 = vld [vmem:[%s0 + $0x78] sm:$0xff]
  %v40 = vld [vmem:[%s1] sm:$0xff]
  %v41 = vld [vmem:[%s1 + $0x8] sm:$0xff]
  %v42 = vld [vmem:[%s1 + $0x10] sm:$0xff]
  %v43 = vld [vmem:[%s1 + $0x18] sm:$0xff]
  %v44 = vld [vmem:[%s1 + $0x20] sm:$0xff]
  %v45 = vld [vmem:[%s1 + $0x28] sm:$0xff]
  %v46 = vld [vmem:[%s1 + $0x30] sm:$0xff]
  %v47 = vld [vmem:[%s1 + $0x38] sm:$0xff]
  %v48 = vld [vmem:[%s1 + $0x40] sm:$0xff]
  %v49 = vld [vmem:[%s1 + $0x48] sm:$0xff]
  %v50 = vld [vmem:[%s1 + $0x50] sm:$0xff]
  %v51 = vld [vmem:[%s1 + $0x58] sm:$0xff]
  %v52 = vld [vmem:[%s1 + $0x60] sm:$0xff]
  %v53 = vld [vmem:[%s1 + $0x68] sm:$0xff]
  %v54 = vld [vmem:[%s1 + $0x70] sm:$0xff]
  %v55 = vld [vmem:[%s1 + $0x78] sm:$0xff]
  %56 = vmatprep.subr.mxu0 0.0
  %57 = vmatpush1.msra.mxu0 %v40
  %58 = vmatprep.subr.mxu0 0.0
  %59 = vmatpush1.msra.mxu0 %v41
  %60 = vmatprep.subr.mxu0 0.0
  %61 = vmatpush1.msra.mxu0 %v42
  %62 = vmatprep.subr.mxu0 0.0
  %63 = vmatpush1.msra.mxu0 %v43
  %64 = vmatprep.subr.mxu0 0.0
  %65 = vmatpush1.msra.mxu0 %v44
  %66 = vmatprep.subr.mxu0 0.0
  %67 = vmatpush1.msra.mxu0 %v45
  %68 = vmatprep.subr.mxu0 0.0
  %69 = vmatpush1.msra.mxu0 %v46
  %70 = vmatprep.subr.mxu0 0.0
  %71 = vmatpush1.msra.mxu0 %v47
  %72 = vmatprep.subr.mxu0 0.0
  %73 = vmatpush1.msra.mxu0 %v48
  %74 = vmatprep.subr.mxu0 0.0
  %75 = vmatpush1.msra.mxu0 %v49
  %76 = vmatprep.subr.mxu0 0.0
  %77 = vmatpush1.msra.mxu0 %v50
  %78 = vmatprep.subr.mxu0 0.0
  %79 = vmatpush1.msra.mxu0 %v51
  %80 = vmatprep.subr.mxu0 0.0
  %81 = vmatpush1.msra.mxu0 %v52
  %82 = vmatprep.subr.mxu0 0.0
  %83 = vmatpush1.msra.mxu0 %v53
  %84 = vmatprep.subr.mxu0 0.0
  %85 = vmatpush1.msra.mxu0 %v54
  %86 = vmatprep.subr.mxu0 0.0
  %87 = vmatpush1.msra.mxu0 %v55
  %88 = vmatprep.subr.mxu0 0.0
  %89 = vmatpush1.msra.mxu0 0.0
  %90 = vmatprep.subr.mxu0 0.0
  %91 = vmatpush1.msra.mxu0 0.0
  %92 = vmatprep.subr.mxu0 0.0
  %93 = vmatpush1.msra.mxu0 0.0
  %94 = vmatprep.subr.mxu0 0.0
  %95 = vmatpush1.msra.mxu0 0.0
  %96 = vmatprep.subr.mxu0 0.0
  %97 = vmatpush1.msra.mxu0 0.0
  %98 = vmatprep.subr.mxu0 0.0
  %99 = vmatpush1.msra.mxu0 0.0
  %100 = vmatprep.subr.mxu0 0.0
  %101 = vmatpush1.msra.mxu0 0.0
  %102 = vmatprep.subr.mxu0 0.0
  %103 = vmatpush1.msra.mxu0 0.0
  %104 = vmatprep.subr.mxu0 0.0
  %105 = vmatpush1.msra.mxu0 0.0
  %106 = vmatprep.subr.mxu0 0.0
  %107 = vmatpush1.msra.mxu0 0.0
  %108 = vmatprep.subr.mxu0 0.0
  %109 = vmatpush1.msra.mxu0 0.0
  %110 = vmatprep.subr.mxu0 0.0
  %111 = vmatpush1.msra.mxu0 0.0
  %112 = vmatprep.subr.mxu0 0.0
  %113 = vmatpush1.msra.mxu0 0.0
  %114 = vmatprep.subr.mxu0 0.0
  %115 = vmatpush1.msra.mxu0 0.0
  %116 = vmatprep.subr.mxu0 0.0
  %117 = vmatpush1.msra.mxu0 0.0
  %118 = vmatprep.subr.mxu0 0.0
  %119 = vmatpush1.msra.mxu0 0.0
  %120 = vmatprep.mubr.f32.mxu0 0.0
  %121 = vmatmul.mubr.f32.gmra.mrb[0].mxu0 %v24
  %v122 = vpop.f32.mrb[0].mxu0
  %v123 = vadd.f32 0.0, %v122
  %v124 = vpop.f32.mrb[0].mxu0
  %125 = vmatprep.mubr.f32.mxu0 0.0
  %126 = vmatmul.mubr.f32.gmra.mrb[0].mxu0 %v25
  %v127 = vpop.f32.mrb[0].mxu0
  %v128 = vadd.f32 0.0, %v127
  %v129 = vpop.f32.mrb[0].mxu0
  %130 = vmatprep.mubr.f32.mxu0 0.0
  %131 = vmatmul.mubr.f32.gmra.mrb[0].mxu0 %v26
  %v132 = vpop.f32.mrb[0].mxu0
  %v133 = vadd.f32 0.0, %v132
  %v134 = vpop.f32.mrb[0].mxu0
  %135 = vmatprep.mubr.f32.mxu0 0.0
  %136 = vmatmul.mubr.f32.gmra.mrb[0].mxu0 %v27
  %v137 = vpop.f32.mrb[0].mxu0
  %v138 = vadd.f32 0.0, %v137
  %v139 = vpop.f32.mrb[0].mxu0
  %140 = vmatprep.mubr.f32.mxu0 0.0
  %141 = vmatmul.mubr.f32.gmra.mrb[0].mxu0 %v28
  %v142 = vpop.f32.mrb[0].mxu0
  %v143 = vadd.f32 0.0, %v142
  %v144 = vpop.f32.mrb[0].mxu0
  %145 = vmatprep.mubr.f32.mxu0 0.0
  %146 = vmatmul.mubr.f32.gmra.mrb[0].mxu0 %v29
  %v147 = vpop.f32.mrb[0].mxu0
  %v148 = vadd.f32 0.0, %v147
  %v149 = vpop.f32.mrb[0].mxu0
  %150 = vmatprep.mubr.f32.mxu0 0.0
  %151 = vmatmul.mubr.f32.gmra.mrb[0].mxu0 %v30
  %v152 = vpop.f32.mrb[0].mxu0
  %v153 = vadd.f32 0.0, %v152
  %v154 = vpop.f32.mrb[0].mxu0
  %155 = vmatprep.mubr.f32.mxu0 0.0
  %156 = vmatmul.mubr.f32.gmra.mrb[0].mxu0 %v31
  %v157 = vpop.f32.mrb[0].mxu0
  %v158 = vadd.f32 0.0, %v157
  %v159 = vpop.f32.mrb[0].mxu0
  %160 = vmatprep.mubr.f32.mxu0 0.0
  %161 = vmatmul.mubr.f32.gmra.mrb[0].mxu0 %v32
  %v162 = vpop.f32.mrb[0].mxu0
  %v163 = vadd.f32 0.0, %v162
  %v164 = vpop.f32.mrb[0].mxu0
  %165 = vmatprep.mubr.f32.mxu0 0.0
  %166 = vmatmul.mubr.f32.gmra.mrb[0].mxu0 %v33
  %v167 = vpop.f32.mrb[0].mxu0
  %v168 = vadd.f32 0.0, %v167
  %v169 = vpop.f32.mrb[0].mxu0
  %170 = vmatprep.mubr.f32.mxu0 0.0
  %171 = vmatmul.mubr.f32.gmra.mrb[0].mxu0 %v34
  %v172 = vpop.f32.mrb[0].mxu0
  %v173 = vadd.f32 0.0, %v172
  %v174 = vpop.f32.mrb[0].mxu0
  %175 = vmatprep.mubr.f32.mxu0 0.0
  %176 = vmatmul.mubr.f32.gmra.mrb[0].mxu0 %v35
  %v177 = vpop.f32.mrb[0].mxu0
  %v178 = vadd.f32 0.0, %v177
  %v179 = vpop.f32.mrb[0].mxu0
  %180 = vmatprep.mubr.f32.mxu0 0.0
  %181 = vmatmul.mubr.f32.gmra.mrb[0].mxu0 %v36
  %v182 = vpop.f32.mrb[0].mxu0
  %v183 = vadd.f32 0.0, %v182
  %v184 = vpop.f32.mrb[0].mxu0
  %185 = vmatprep.mubr.f32.mxu0 0.0
  %186 = vmatmul.mubr.f32.gmra.mrb[0].mxu0 %v37
  %v187 = vpop.f32.mrb[0].mxu0
  %v188 = vadd.f32 0.0, %v187
  %v189 = vpop.f32.mrb[0].mxu0
  %190 = vmatprep.mubr.f32.mxu0 0.0
  %191 = vmatmul.mubr.f32.gmra.mrb[0].mxu0 %v38
  %v192 = vpop.f32.mrb[0].mxu0
  %v193 = vadd.f32 0.0, %v192
  %v194 = vpop.f32.mrb[0].mxu0
  %195 = vmatprep.mubr.f32.mxu0 0.0
  %196 = vmatmul.mubr.f32.gmra.mrb[0].mxu0 %v39
  %v197 = vpop.f32.mrb[0].mxu0
  %v198 = vadd.f32 0.0, %v197
  %v199 = vpop.f32.mrb[0].mxu0
  %200 = vdwg.mxu0
  %v201 = vld [vmem:[%s2] sm:$0xff]
  %v202 = vld [vmem:[%s2 + $0x8] sm:$0xff]
  %v203 = vld [vmem:[%s2 + $0x10] sm:$0xff]
  %v204 = vld [vmem:[%s2 + $0x18] sm:$0xff]
  %v205 = vld [vmem:[%s2 + $0x20] sm:$0xff]
  %v206 = vld [vmem:[%s2 + $0x28] sm:$0xff]
  %v207 = vld [vmem:[%s2 + $0x30] sm:$0xff]
  %v208 = vld [vmem:[%s2 + $0x38] sm:$0xff]
  %v209 = vld [vmem:[%s2 + $0x40] sm:$0xff]
  %v210 = vld [vmem:[%s2 + $0x48] sm:$0xff]
  %v211 = vld [vmem:[%s2 + $0x50] sm:$0xff]
  %v212 = vld [vmem:[%s2 + $0x58] sm:$0xff]
  %v213 = vld [vmem:[%s2 + $0x60] sm:$0xff]
  %v214 = vld [vmem:[%s2 + $0x68] sm:$0xff]
  %v215 = vld [vmem:[%s2 + $0x70] sm:$0xff]
  %v216 = vld [vmem:[%s2 + $0x78] sm:$0xff]
  %v217 = vld [vmem:[%s3] sm:$0x1]
  %218 = vset.pattern.permute.xlu0 0
  %219 = vperm.xlu0 %218, %v201
  %v220 = vpop.permute.xlu0 %219
  %221 = vset.pattern.permute.xlu0 0
  %222 = vperm.xlu0 %221, %v202
  %v223 = vpop.permute.xlu0 %222
  %224 = vset.pattern.permute.xlu0 0
  %225 = vperm.xlu0 %224, %v203
  %v226 = vpop.permute.xlu0 %225
  %227 = vset.pattern.permute.xlu0 0
  %228 = vperm.xlu0 %227, %v204
  %v229 = vpop.permute.xlu0 %228
  %230 = vset.pattern.permute.xlu0 0
  %231 = vperm.xlu0 %230, %v205
  %v232 = vpop.permute.xlu0 %231
  %233 = vset.pattern.permute.xlu0 0
  %234 = vperm.xlu0 %233, %v206
  %v235 = vpop.permute.xlu0 %234
  %236 = vset.pattern.permute.xlu0 0
  %237 = vperm.xlu0 %236, %v207
  %v238 = vpop.permute.xlu0 %237
  %239 = vset.pattern.permute.xlu0 0
  %240 = vperm.xlu0 %239, %v208
  %v241 = vpop.permute.xlu0 %240
  %242 = vset.pattern.permute.xlu0 0
  %243 = vperm.xlu0 %242, %v209
  %v244 = vpop.permute.xlu0 %243
  %245 = vset.pattern.permute.xlu0 0
  %246 = vperm.xlu0 %245, %v210
  %v247 = vpop.permute.xlu0 %246
  %248 = vset.pattern.permute.xlu0 0
  %249 = vperm.xlu0 %248, %v211
  %v250 = vpop.permute.xlu0 %249
  %251 = vset.pattern.permute.xlu0 0
  %252 = vperm.xlu0 %251, %v212
  %v253 = vpop.permute.xlu0 %252
  %254 = vset.pattern.permute.xlu0 0
  %255 = vperm.xlu0 %254, %v213
  %v256 = vpop.permute.xlu0 %255
  %257 = vset.pattern.permute.xlu0 0
  %258 = vperm.xlu0 %257, %v214
  %v259 = vpop.permute.xlu0 %258
  %260 = vset.pattern.permute.xlu0 0
  %261 = vperm.xlu0 %260, %v215
  %v262 = vpop.permute.xlu0 %261
  %263 = vset.pattern.permute.xlu0 0
  %264 = vperm.xlu0 %263, %v216
  %v265 = vpop.permute.xlu0 %264
  %v266 = vlaneseq
  %v267 = vshrl.u32 %v266, 7
  %v268 = vsub.s32 0, %v267
  %v269 = vrot.slane %v217, %v268
  %vm270 = vcmp.eq.s32.totalorder %v220, %v269
  %vm271 = vcmp.eq.s32.totalorder %v223, %v269
  %vm272 = vcmp.eq.s32.totalorder %v226, %v269
  %vm273 = vcmp.eq.s32.totalorder %v229, %v269
  %vm274 = vcmp.eq.s32.totalorder %v232, %v269
  %vm275 = vcmp.eq.s32.totalorder %v235, %v269
  %vm276 = vcmp.eq.s32.totalorder %v238, %v269
  %vm277 = vcmp.eq.s32.totalorder %v241, %v269
  %vm278 = vcmp.eq.s32.totalorder %v244, %v269
  %vm279 = vcmp.eq.s32.totalorder %v247, %v269
  %vm280 = vcmp.eq.s32.totalorder %v250, %v269
  %vm281 = vcmp.eq.s32.totalorder %v253, %v269
  %vm282 = vcmp.eq.s32.totalorder %v256, %v269
  %vm283 = vcmp.eq.s32.totalorder %v259, %v269
  %vm284 = vcmp.eq.s32.totalorder %v262, %v269
  %vm285 = vcmp.eq.s32.totalorder %v265, %v269
  %v286 = vsub.f32 %v123, 14.285714
  %v287 = vsub.f32 %v128, 14.285714
  %v288 = vsub.f32 %v133, 14.285714
  %v289 = vsub.f32 %v138, 14.285714
  %v290 = vsub.f32 %v143, 14.285714
  %v291 = vsub.f32 %v148, 14.285714
  %v292 = vsub.f32 %v153, 14.285714
  %v293 = vsub.f32 %v158, 14.285714
  %v294 = vsub.f32 %v163, 14.285714
  %v295 = vsub.f32 %v168, 14.285714
  %v296 = vsub.f32 %v173, 14.285714
  %v297 = vsub.f32 %v178, 14.285714
  %v298 = vsub.f32 %v183, 14.285714
  %v299 = vsub.f32 %v188, 14.285714
  %v300 = vsub.f32 %v193, 14.285714
  %v301 = vsub.f32 %v198, 14.285714
  %v302 = vmul.f32 %v286, 1.442695
  %v303 = vpow.pop %v302
  %v304 = vmul.f32 %v287, 1.442695
  %v305 = vpow.pop %v304
  %v306 = vmul.f32 %v288, 1.442695
  %v307 = vpow.pop %v306
  %v308 = vmul.f32 %v289, 1.442695
  %v309 = vpow.pop %v308
  %v310 = vmul.f32 %v290, 1.442695
  %v311 = vpow.pop %v310
  %v312 = vmul.f32 %v291, 1.442695
  %v313 = vpow.pop %v312
  %v314 = vmul.f32 %v292, 1.442695
  %v315 = vpow.pop %v314
  %v316 = vmul.f32 %v293, 1.442695
  %v317 = vpow.pop %v316
  %v318 = vmul.f32 %v294, 1.442695
  %v319 = vpow.pop %v318
  %v320 = vmul.f32 %v295, 1.442695
  %v321 = vpow.pop %v320
  %v322 = vmul.f32 %v296, 1.442695
  %v323 = vpow.pop %v322
  %v324 = vmul.f32 %v297, 1.442695
  %v325 = vpow.pop %v324
  %v326 = vmul.f32 %v298, 1.442695
  %v327 = vpow.pop %v326
  %v328 = vmul.f32 %v299, 1.442695
  %v329 = vpow.pop %v328
  %v330 = vmul.f32 %v300, 1.442695
  %v331 = vpow.pop %v330
  %v332 = vmul.f32 %v301, 1.442695
  %v333 = vpow.pop %v332
  %s334 = smul.u32 0, 128
  %s335 = smul.u32 0, 128
  %s336 = sadd.s32 %s334, 128
  %p337 = scmp.lt.s32.totalorder %s335, %s336
  %s338 = sadd.s32 %s335, 128
  %p339 = scmp.lt.s32.totalorder %s334, %s338
  %p340 = pnand %p337, %p339
  %p341 = pneg %p340
  %p342 = scmp.gt.s32.totalorder %s336, 8
  %p343 = por %p341, %p342
  // Predicated region
  $region22: #{supcon_loss.1} parent=0 // pred_check
    %p344 = pneg %p343
  $region23: #{supcon_loss.1} parent=0 // pred_check_branch
    %346 = sbr.rel (%p344) target = $region25
  $region24: #{supcon_loss.1} parent=0 // pred_region
    %v347 = vlaneseq
    %v348 = vshrl.u32 %v347, 7
    %v349 = vadd.s32 %v348, 8
    %v350 = vadd.s32 %v348, 16
    %v351 = vadd.s32 %v348, 24
    %v352 = vadd.s32 %v348, 32
    %v353 = vadd.s32 %v348, 40
    %v354 = vadd.s32 %v348, 48
    %v355 = vadd.s32 %v348, 56
    %v356 = vadd.s32 %v348, 64
    %v357 = vadd.s32 %v348, 72
    %v358 = vadd.s32 %v348, 80
    %v359 = vadd.s32 %v348, 88
    %v360 = vadd.s32 %v348, 96
    %v361 = vadd.s32 %v348, 104
    %v362 = vadd.s32 %v348, 112
    %v363 = vadd.s32 %v348, 120
    %v364 = vstv %s334
    %v365 = vadd.s32 %v364, %v348
    %v366 = vadd.s32 %v364, %v349
    %v367 = vadd.s32 %v364, %v350
    %v368 = vadd.s32 %v364, %v351
    %v369 = vadd.s32 %v364, %v352
    %v370 = vadd.s32 %v364, %v353
    %v371 = vadd.s32 %v364, %v354
    %v372 = vadd.s32 %v364, %v355
    %v373 = vadd.s32 %v364, %v356
    %v374 = vadd.s32 %v364, %v357
    %v375 = vadd.s32 %v364, %v358
    %v376 = vadd.s32 %v364, %v359
    %v377 = vadd.s32 %v364, %v360
    %v378 = vadd.s32 %v364, %v361
    %v379 = vadd.s32 %v364, %v362
    %v380 = vadd.s32 %v364, %v363
    %v381 = vlaneseq
    %v382 = vand.u32 %v381, 127
    %v383 = vstv %s335
    %v384 = vadd.s32 %v383, %v382
    %vm385 = vcmp.ne.s32.totalorder %v365, %v384
    %vm386 = vcmp.ne.s32.totalorder %v366, %v384
    %vm387 = vcmp.ne.s32.totalorder %v367, %v384
    %vm388 = vcmp.ne.s32.totalorder %v368, %v384
    %vm389 = vcmp.ne.s32.totalorder %v369, %v384
    %vm390 = vcmp.ne.s32.totalorder %v370, %v384
    %vm391 = vcmp.ne.s32.totalorder %v371, %v384
    %vm392 = vcmp.ne.s32.totalorder %v372, %v384
    %vm393 = vcmp.ne.s32.totalorder %v373, %v384
    %vm394 = vcmp.ne.s32.totalorder %v374, %v384
    %vm395 = vcmp.ne.s32.totalorder %v375, %v384
    %vm396 = vcmp.ne.s32.totalorder %v376, %v384
    %vm397 = vcmp.ne.s32.totalorder %v377, %v384
    %vm398 = vcmp.ne.s32.totalorder %v378, %v384
    %vm399 = vcmp.ne.s32.totalorder %v379, %v384
    %vm400 = vcmp.ne.s32.totalorder %v380, %v384
    %vm401 = vcmp.lt.s32.totalorder %v365, 8
    %vm402 = vcmp.lt.s32.totalorder %v366, 8
    %vm403 = vcmp.lt.s32.totalorder %v367, 8
    %vm404 = vcmp.lt.s32.totalorder %v368, 8
    %vm405 = vcmp.lt.s32.totalorder %v369, 8
    %vm406 = vcmp.lt.s32.totalorder %v370, 8
    %vm407 = vcmp.lt.s32.totalorder %v371, 8
    %vm408 = vcmp.lt.s32.totalorder %v372, 8
    %vm409 = vcmp.lt.s32.totalorder %v373, 8
    %vm410 = vcmp.lt.s32.totalorder %v374, 8
    %vm411 = vcmp.lt.s32.totalorder %v375, 8
    %vm412 = vcmp.lt.s32.totalorder %v376, 8
    %vm413 = vcmp.lt.s32.totalorder %v377, 8
    %vm414 = vcmp.lt.s32.totalorder %v378, 8
    %vm415 = vcmp.lt.s32.totalorder %v379, 8
    %vm416 = vcmp.lt.s32.totalorder %v380, 8
    %vm417 = vmand %vm385, %vm401
    %vm418 = vmand %vm386, %vm402
    %vm419 = vmand %vm387, %vm403
    %vm420 = vmand %vm388, %vm404
    %vm421 = vmand %vm389, %vm405
    %vm422 = vmand %vm390, %vm406
    %vm423 = vmand %vm391, %vm407
    %vm424 = vmand %vm392, %vm408
    %vm425 = vmand %vm393, %vm409
    %vm426 = vmand %vm394, %vm410
    %vm427 = vmand %vm395, %vm411
    %vm428 = vmand %vm396, %vm412
    %vm429 = vmand %vm397, %vm413
    %vm430 = vmand %vm398, %vm414
    %vm431 = vmand %vm399, %vm415
    %vm432 = vmand %vm400, %vm416
    %vm433 = vmand %vm417, %vm270
    %vm434 = vmand %vm418, %vm271
    %vm435 = vmand %vm419, %vm272
    %vm436 = vmand %vm420, %vm273
    %vm437 = vmand %vm421, %vm274
    %vm438 = vmand %vm422, %vm275
    %vm439 = vmand %vm423, %vm276
    %vm440 = vmand %vm424, %vm277
    %vm441 = vmand %vm425, %vm278
    %vm442 = vmand %vm426, %vm279
    %vm443 = vmand %vm427, %vm280
    %vm444 = vmand %vm428, %vm281
    %vm445 = vmand %vm429, %vm282
    %vm446 = vmand %vm430, %vm283
    %vm447 = vmand %vm431, %vm284
    %vm448 = vmand %vm432, %vm285
    %v449 = vld [vmem:[#allocation2] sm:$0x1]
    %v450 = vsel %vm417, %v303, 0.0
    %v451 = vsel %vm418, %v305, 0.0
    %v452 = vsel %vm419, %v307, 0.0
    %v453 = vsel %vm420, %v309, 0.0
    %v454 = vsel %vm421, %v311, 0.0
    %v455 = vsel %vm422, %v313, 0.0
    %v456 = vsel %vm423, %v315, 0.0
    %v457 = vsel %vm424, %v317, 0.0
    %v458 = vsel %vm425, %v319, 0.0
    %v459 = vsel %vm426, %v321, 0.0
    %v460 = vsel %vm427, %v323, 0.0
    %v461 = vsel %vm428, %v325, 0.0
    %v462 = vsel %vm429, %v327, 0.0
    %v463 = vsel %vm430, %v329, 0.0
    %v464 = vsel %vm431, %v331, 0.0
    %v465 = vsel %vm432, %v333, 0.0
    %v466 = vadd.f32 %v450, %v451
    %v467 = vadd.f32 %v466, %v452
    %v468 = vadd.f32 %v467, %v453
    %v469 = vadd.f32 %v468, %v454
    %v470 = vadd.f32 %v469, %v455
    %v471 = vadd.f32 %v470, %v456
    %v472 = vadd.f32 %v471, %v457
    %v473 = vadd.f32 %v472, %v458
    %v474 = vadd.f32 %v473, %v459
    %v475 = vadd.f32 %v474, %v460
    %v476 = vadd.f32 %v475, %v461
    %v477 = vadd.f32 %v476, %v462
    %v478 = vadd.f32 %v477, %v463
    %v479 = vadd.f32 %v478, %v464
    %v480 = vadd.f32 %v479, %v465
    %v481 = vrot.slane %v480, 4
    %v482 = vadd.f32 %v480, %v481
    %v483 = vrot.slane %v482, 2
    %v484 = vadd.f32 %v482, %v483
    %v485 = vrot.slane %v484, 1
    %v486 = vadd.f32 %v484, %v485
    %v487 = vadd.f32 %v449, %v486
    %488 = vst [vmem:[#allocation2] sm:$0x1] %v487
    %v489 = vld [vmem:[#allocation3] sm:$0x1]
    %v490 = vsel %vm433, %v123, 0.0
    %v491 = vsel %vm434, %v128, 0.0
    %v492 = vsel %vm435, %v133, 0.0
    %v493 = vsel %vm436, %v138, 0.0
    %v494 = vsel %vm437, %v143, 0.0
    %v495 = vsel %vm438, %v148, 0.0
    %v496 = vsel %vm439, %v153, 0.0
    %v497 = vsel %vm440, %v158, 0.0
    %v498 = vsel %vm441, %v163, 0.0
    %v499 = vsel %vm442, %v168, 0.0
    %v500 = vsel %vm443, %v173, 0.0
    %v501 = vsel %vm444, %v178, 0.0
    %v502 = vsel %vm445, %v183, 0.0
    %v503 = vsel %vm446, %v188, 0.0
    %v504 = vsel %vm447, %v193, 0.0
    %v505 = vsel %vm448, %v198, 0.0
    %v506 = vadd.f32 %v490, %v491
    %v507 = vadd.f32 %v506, %v492
    %v508 = vadd.f32 %v507, %v493
    %v509 = vadd.f32 %v508, %v494
    %v510 = vadd.f32 %v509, %v495
    %v511 = vadd.f32 %v510, %v496
    %v512 = vadd.f32 %v511, %v497
    %v513 = vadd.f32 %v512, %v498
    %v514 = vadd.f32 %v513, %v499
    %v515 = vadd.f32 %v514, %v500
    %v516 = vadd.f32 %v515, %v501
    %v517 = vadd.f32 %v516, %v502
    %v518 = vadd.f32 %v517, %v503
    %v519 = vadd.f32 %v518, %v504
    %v520 = vadd.f32 %v519, %v505
    %v521 = vrot.slane %v520, 4
    %v522 = vadd.f32 %v520, %v521
    %v523 = vrot.slane %v522, 2
    %v524 = vadd.f32 %v522, %v523
    %v525 = vrot.slane %v524, 1
    %v526 = vadd.f32 %v524, %v525
    %v527 = vadd.f32 %v489, %v526
    %528 = vst [vmem:[#allocation3] sm:$0x1] %v527
    %v529 = vld [vmem:[#allocation4] sm:$0x1]
    %v530 = vsel %vm433, 1.0, 0.0
    %v531 = vsel %vm434, 1.0, 0.0
    %v532 = vsel %vm435, 1.0, 0.0
    %v533 = vsel %vm436, 1.0, 0.0
    %v534 = vsel %vm437, 1.0, 0.0
    %v535 = vsel %vm438, 1.0, 0.0
    %v536 = vsel %vm439, 1.0, 0.0
    %v537 = vsel %vm440, 1.0, 0.0
    %v538 = vsel %vm441, 1.0, 0.0
    %v539 = vsel %vm442, 1.0, 0.0
    %v540 = vsel %vm443, 1.0, 0.0
    %v541 = vsel %vm444, 1.0, 0.0
    %v542 = vsel %vm445, 1.0, 0.0
    %v543 = vsel %vm446, 1.0, 0.0
    %v544 = vsel %vm447, 1.0, 0.0
    %v545 = vsel %vm448, 1.0, 0.0
    %v546 = vadd.f32 %v530, %v531
    %v547 = vadd.f32 %v546, %v532
    %v548 = vadd.f32 %v547, %v533
    %v549 = vadd.f32 %v548, %v534
    %v550 = vadd.f32 %v549, %v535
    %v551 = vadd.f32 %v550, %v536
    %v552 = vadd.f32 %v551, %v537
    %v553 = vadd.f32 %v552, %v538
    %v554 = vadd.f32 %v553, %v539
    %v555 = vadd.f32 %v554, %v540
    %v556 = vadd.f32 %v555, %v541
    %v557 = vadd.f32 %v556, %v542
    %v558 = vadd.f32 %v557, %v543
    %v559 = vadd.f32 %v558, %v544
    %v560 = vadd.f32 %v559, %v545
    %v561 = vrot.slane %v560, 4
    %v562 = vadd.f32 %v560, %v561
    %v563 = vrot.slane %v562, 2
    %v564 = vadd.f32 %v562, %v563
    %v565 = vrot.slane %v564, 1
    %v566 = vadd.f32 %v564, %v565
    %v567 = vadd.f32 %v529, %v566
    %568 = vst [vmem:[#allocation4] sm:$0x1] %v567
  $region25: #{supcon_loss.1} parent=0 // pred_fallthru
    _
  %p569 = pneg %p343
  // Predicated region
  $region26: #{supcon_loss.1} parent=0 // pred_check
    _
  $region27: #{supcon_loss.1} parent=0 // pred_check_branch
    %571 = sbr.rel (%p343) target = $region29
  $region28: #{supcon_loss.1} parent=0 // pred_region
    %v572 = vld [vmem:[#allocation2] sm:$0x1]
    %v573 = vadd.f32 %v303, %v305
    %v574 = vadd.f32 %v573, %v307
    %v575 = vadd.f32 %v574, %v309
    %v576 = vadd.f32 %v575, %v311
    %v577 = vadd.f32 %v576, %v313
    %v578 = vadd.f32 %v577, %v315
    %v579 = vadd.f32 %v578, %v317
    %v580 = vadd.f32 %v579, %v319
    %v581 = vadd.f32 %v580, %v321
    %v582 = vadd.f32 %v581, %v323
    %v583 = vadd.f32 %v582, %v325
    %v584 = vadd.f32 %v583, %v327
    %v585 = vadd.f32 %v584, %v329
    %v586 = vadd.f32 %v585, %v331
    %v587 = vadd.f32 %v586, %v333
    %v588 = vrot.slane %v587, 4
    %v589 = vadd.f32 %v587, %v588
    %v590 = vrot.slane %v589, 2
    %v591 = vadd.f32 %v589, %v590
    %v592 = vrot.slane %v591, 1
    %v593 = vadd.f32 %v591, %v592
    %v594 = vadd.f32 %v572, %v593
    %595 = vst [vmem:[#allocation2] sm:$0x1] %v594
    %v596 = vld [vmem:[#allocation3] sm:$0x1]
    %v597 = vsel %vm270, %v123, 0.0
    %v598 = vsel %vm271, %v128, 0.0
    %v599 = vsel %vm272, %v133, 0.0
    %v600 = vsel %vm273, %v138, 0.0
    %v601 = vsel %vm274, %v143, 0.0
    %v602 = vsel %vm275, %v148, 0.0
    %v603 = vsel %vm276, %v153, 0.0
    %v604 = vsel %vm277, %v158, 0.0
    %v605 = vsel %vm278, %v163, 0.0
    %v606 = vsel %vm279, %v168, 0.0
    %v607 = vsel %vm280, %v173, 0.0
    %v608 = vsel %vm281, %v178, 0.0
    %v609 = vsel %vm282, %v183, 0.0
    %v610 = vsel %vm283, %v188, 0.0
    %v611 = vsel %vm284, %v193, 0.0
    %v612 = vsel %vm285, %v198, 0.0
    %v613 = vadd.f32 %v597, %v598
    %v614 = vadd.f32 %v613, %v599
    %v615 = vadd.f32 %v614, %v600
    %v616 = vadd.f32 %v615, %v601
    %v617 = vadd.f32 %v616, %v602
    %v618 = vadd.f32 %v617, %v603
    %v619 = vadd.f32 %v618, %v604
    %v620 = vadd.f32 %v619, %v605
    %v621 = vadd.f32 %v620, %v606
    %v622 = vadd.f32 %v621, %v607
    %v623 = vadd.f32 %v622, %v608
    %v624 = vadd.f32 %v623, %v609
    %v625 = vadd.f32 %v624, %v610
    %v626 = vadd.f32 %v625, %v611
    %v627 = vadd.f32 %v626, %v612
    %v628 = vrot.slane %v627, 4
    %v629 = vadd.f32 %v627, %v628
    %v630 = vrot.slane %v629, 2
    %v631 = vadd.f32 %v629, %v630
    %v632 = vrot.slane %v631, 1
    %v633 = vadd.f32 %v631, %v632
    %v634 = vadd.f32 %v596, %v633
    %635 = vst [vmem:[#allocation3] sm:$0x1] %v634
    %v636 = vld [vmem:[#allocation4] sm:$0x1]
    %v637 = vsel %vm270, 1.0, 0.0
    %v638 = vsel %vm271, 1.0, 0.0
    %v639 = vsel %vm272, 1.0, 0.0
    %v640 = vsel %vm273, 1.0, 0.0
    %v641 = vsel %vm274, 1.0, 0.0
    %v642 = vsel %vm275, 1.0, 0.0
    %v643 = vsel %vm276, 1.0, 0.0
    %v644 = vsel %vm277, 1.0, 0.0
    %v645 = vsel %vm278, 1.0, 0.0
    %v646 = vsel %vm279, 1.0, 0.0
    %v647 = vsel %vm280, 1.0, 0.0
    %v648 = vsel %vm281, 1.0, 0.0
    %v649 = vsel %vm282, 1.0, 0.0
    %v650 = vsel %vm283, 1.0, 0.0
    %v651 = vsel %vm284, 1.0, 0.0
    %v652 = vsel %vm285, 1.0, 0.0
    %v653 = vadd.f32 %v637, %v638
    %v654 = vadd.f32 %v653, %v639
    %v655 = vadd.f32 %v654, %v640
    %v656 = vadd.f32 %v655, %v641
    %v657 = vadd.f32 %v656, %v642
    %v658 = vadd.f32 %v657, %v643
    %v659 = vadd.f32 %v658, %v644
    %v660 = vadd.f32 %v659, %v645
    %v661 = vadd.f32 %v660, %v646
    %v662 = vadd.f32 %v661, %v647
    %v663 = vadd.f32 %v662, %v648
    %v664 = vadd.f32 %v663, %v649
    %v665 = vadd.f32 %v664, %v650
    %v666 = vadd.f32 %v665, %v651
    %v667 = vadd.f32 %v666, %v652
    %v668 = vrot.slane %v667, 4
    %v669 = vadd.f32 %v667, %v668
    %v670 = vrot.slane %v669, 2
    %v671 = vadd.f32 %v669, %v670
    %v672 = vrot.slane %v671, 1
    %v673 = vadd.f32 %v671, %v672
    %v674 = vadd.f32 %v636, %v673
    %675 = vst [vmem:[#allocation4] sm:$0x1] %v674
  $region29: #{supcon_loss.1} parent=0 // pred_fallthru
    _
  // Predicated region
  $region30: #{supcon_loss.1} parent=0 // pred_check
    %p676 = pneg %p17
  $region31: #{supcon_loss.1} parent=0 // pred_check_branch
    %678 = sbr.rel (%p676) target = $region33
  $region32: #{supcon_loss.1} parent=0 // pred_region
    %v679 = vld [vmem:[#allocation2] sm:$0x1]
    %v680 = vlog2.pop %v679
    %v681 = vmul.f32 %v680, 0.6931472
    %v682 = vadd.f32 %v681, 14.285714
    %v683 = vld [vmem:[#allocation4] sm:$0x1]
    %vm684 = vcmp.lt.f32.partialorder %v683, 1e-06
    %v685 = vsel %vm684, 1.0, %v683
    %v686 = vld [vmem:[#allocation3] sm:$0x1]
    %v687 = vmul.f32 %v683, %v682
    %v688 = vsub.f32 %v686, %v687
    %v689 = vrcp.pop %v685
    %v690 = vmul.f32 %v688, %v689
    %v691 = vmul.f32 %v690, -1.0
    %692 = vst [vmem:[%s4] sm:$0x1] %v691
  $region33: #{supcon_loss.1} parent=0 // pred_fallthru
    _
  // Predicated region
  $region34: #{supcon_loss.1} parent=0 // pred_check
    _
  $region35: #{supcon_loss.1} parent=0 // pred_check_branch
    %694 = sbr.rel (0) target = $region37
  $region36: #{supcon_loss.1} parent=0 // pred_region
    _
  $region37: #{supcon_loss.1} parent=0 // pred_fallthru
    _
  // Predicated region
  $region38: #{supcon_loss.1} parent=0 // pred_check
    _
  $region39: #{supcon_loss.1} parent=0 // pred_check_branch
    %696 = sbr.rel (0) target = $region41
  $region40: #{supcon_loss.1} parent=0 // pred_region
    _
  $region41: #{supcon_loss.1} parent=0 // pred_fallthru
    _

</llo_original>
